<compile_context>
chip_gen: v5e
topology: v5e:2x2
jax: 0.10.0
libtpu: 0.0.40
codegen_flags: <defaults>
</compile_context>

<pallas_src>
import functools

import jax
import jax.numpy as jnp
from jax import lax
from jax.experimental import pallas as pl
from jax.experimental.pallas import tpu as pltpu


def _round_up(x, m):
    return ((x + m - 1) // m) * m


def _cdiv(a, b):
    return (a + b - 1) // b


def _supcon_kernel(lc_ref, lr_ref, pc_ref, a_ref, ct_ref, out_ref,
                   a_scr, m_scr, l_scr, s_scr,
                   *, inv_temp, scale, ignore_index):
    ni = pl.program_id(1)
    tb = lc_ref.shape[0]
    tn = lr_ref.shape[1]

    # ---- per-B-tile init: scaled anchor (hoisted out of the N sweep) + accumulators
    @pl.when(ni == 0)
    def _():
        a_scr[...] = (a_ref[...].astype(jnp.float32) * inv_temp).astype(a_scr.dtype)
        m_scr[...] = jnp.full(m_scr.shape, -jnp.inf, dtype=jnp.float32)
        l_scr[...] = jnp.zeros(l_scr.shape, dtype=jnp.float32)
        s_scr[...] = jnp.zeros(s_scr.shape, dtype=jnp.float32)

    # ---- logits tile on the MXU: [TB, D] @ [D, TN] -> [TB, TN] f32 accumulation
    logits = lax.dot_general(
        a_scr[...], ct_ref[...], (((1,), (0,)), ((), ())),
        preferred_element_type=jnp.float32)

    # ---- fused boolean masks (broadcast [TB,1] x [1,TN]; no full-size iotas)
    row_id = pl.program_id(0) * tb + lax.broadcasted_iota(jnp.int32, (tb, 1), 0)
    col_id = ni * tn + lax.broadcasted_iota(jnp.int32, (1, tn), 1)
    lr = lr_ref[...]                                   # [1, TN] int32
    valid = lr != ignore_index                         # [1, TN]
    keep = (row_id != col_id) & valid                  # denominator mask [TB, TN]
    pos = (lc_ref[...] == lr) & keep                   # positives mask   [TB, TN]

    # ---- online softmax denominator over kept columns
    m_prev = m_scr[...]                                # [TB, 1]
    m_new = jnp.maximum(m_prev, jnp.max(logits, axis=1, keepdims=True))
    alpha = jnp.exp(m_prev - m_new)                    # exp(-inf) = 0 on first step
    e = jnp.where(keep, jnp.exp(logits - m_new), 0.0)
    l_scr[...] = alpha * l_scr[...] + jnp.sum(e, axis=1, keepdims=True)
    m_scr[...] = m_new

    # ---- positive-pair running sum of raw logits (shift cancels analytically)
    s_scr[...] = s_scr[...] + jnp.sum(jnp.where(pos, logits, 0.0),
                                      axis=1, keepdims=True)

    # ---- finalize per-row loss on the last N tile
    @pl.when(ni == pl.num_programs(1) - 1)
    def _():
        p = pc_ref[...]                                # precomputed positive counts
        # epsilon is a no-op for well-posed inputs; just blocks -inf propagation
        log_denom = m_scr[...] + jnp.log(l_scr[...] + 1e-30)
        mean_log_prob_pos = (s_scr[...] - p * log_denom) / (p + 1e-12)
        out_ref[...] = (scale * mean_log_prob_pos).astype(out_ref.dtype)


def _vmem_budget_bytes():
    try:
        cap = int(pltpu.get_tpu_info().vmem_capacity_bytes)
    except Exception:
        cap = 64 * 1024 * 1024            # v7x-safe fallback if query unavailable
    return max(32 * 1024 * 1024, min(int(0.75 * cap), cap - 16 * 1024 * 1024))


def supcon_loss(features, labels, *, temperature=0.1, contrast_mode='one',
                base_temperature=0.07, ignore_index=-1, compute_dtype=None):
    """Pallas implementation of SupConLoss.forward(features, labels)."""
    if features.ndim < 3:
        raise ValueError('`features` needs to be [bsz, n_views, ...]')
    if contrast_mode != 'one':
        raise NotImplementedError("only contrast_mode='one' is implemented")

    B, V = features.shape[0], features.shape[1]
    feats = features.reshape(B, V, -1)                  # [B, V, D]
    if compute_dtype is not None:                       # e.g. bf16 on v5e
        feats = feats.astype(compute_dtype)
    D = feats.shape[-1]
    N = V * B

    labels = labels.reshape(-1).astype(jnp.int32)
    if labels.shape[0] != B:
        raise ValueError('Num of labels does not match num of features')

    # anchor = view 0; contrast = view-major concat, pre-transposed to [D, N]
    anchor = feats[:, 0]                                # [B, D]
    contrast_t = jnp.swapaxes(feats, 0, 1).reshape(N, D).T   # [D, N]
    labels_row = jnp.tile(labels, V)                    # [N]

    # per-row positive counts: depend only on labels, precomputed in XLA (cheap)
    valid_col = labels_row != ignore_index
    same = (labels[:, None] == labels_row[None, :]) & valid_col[None, :]
    not_diag = (jnp.arange(N, dtype=jnp.int32)[None, :]
                != jnp.arange(B, dtype=jnp.int32)[:, None])
    pos_count = jnp.sum(same & not_diag, axis=1).astype(jnp.float32)   # [B]

    # ---- tile sizes: K padded only to the sublane pack, TB/TN gated by VMEM budget
    itemsize = jnp.dtype(feats.dtype).itemsize
    sub_pack = {4: 8, 2: 16, 1: 32}.get(itemsize, 8)
    D_pad = _round_up(D, sub_pack)

    budget = _vmem_budget_bytes()

    def vmem_use(tb, tn):
        ct = 3 * D_pad * tn * itemsize                  # up to 3 contrast buffers
        anc = 2 * tb * D_pad * itemsize                 # double-buffered anchor
        small = 2 * 8 * tn * 4 + 4 * 2 * tb * 128 * 4   # label row/col, counts, out
        scr = tb * D_pad * itemsize + 3 * tb * 128 * 4  # scaled anchor + m/l/s
        temps = 6 * tb * tn * 4                         # live [TB,TN] f32 temporaries
        return ct + anc + small + scr + temps

    TB = _round_up(_cdiv(B, max(1, _cdiv(B, 256))), 8)
    TN = _round_up(_cdiv(N, max(1, _cdiv(N, 2048))), 128)
    while TN > 128 and vmem_use(TB, TN) > budget:
        TN = _round_up(_cdiv(TN, 2), 128)
    while TB > 8 and vmem_use(TB, TN) > budget:
        TB = _round_up(_cdiv(TB, 2), 8)

    B_pad = _round_up(B, TB)
    N_pad = _round_up(N, TN)

    anchor_p = jnp.zeros((B_pad, D_pad), feats.dtype).at[:B, :D].set(anchor)
    ct_p = jnp.zeros((D_pad, N_pad), feats.dtype).at[:D, :N].set(contrast_t)
    # padded rows/cols get ignore_index -> excluded from both masks, contribute 0
    lc = jnp.full((B_pad, 1), ignore_index, jnp.int32).at[:B, 0].set(labels)
    lr = jnp.full((1, N_pad), ignore_index, jnp.int32).at[0, :N].set(labels_row)
    pc = jnp.zeros((B_pad, 1), jnp.float32).at[:B, 0].set(pos_count)

    kernel = functools.partial(
        _supcon_kernel,
        inv_temp=float(1.0 / temperature),
        scale=float(-(temperature / base_temperature)),
        ignore_index=int(ignore_index))

    n_steps_n = N_pad // TN
    ct_kwargs = {}
    if n_steps_n >= 3:
        ct_kwargs['pipeline_mode'] = pl.Buffered(3)     # deepen the only per-step stream
    ct_spec = pl.BlockSpec((D_pad, TN), lambda bi, ni: (0, ni), **ct_kwargs)

    grid = (B_pad // TB, n_steps_n)
    loss_rows = pl.pallas_call(
        kernel,
        out_shape=jax.ShapeDtypeStruct((B_pad, 1), jnp.float32),
        grid_spec=pltpu.PrefetchScalarGridSpec(
            num_scalar_prefetch=0,
            grid=grid,
            in_specs=[
                pl.BlockSpec((TB, 1), lambda bi, ni: (bi, 0)),      # labels column
                pl.BlockSpec((1, TN), lambda bi, ni: (0, ni)),      # labels row
                pl.BlockSpec((TB, 1), lambda bi, ni: (bi, 0)),      # positive counts
                pl.BlockSpec((TB, D_pad), lambda bi, ni: (bi, 0)),  # anchor
                ct_spec,                                            # contrast^T
            ],
            out_specs=pl.BlockSpec((TB, 1), lambda bi, ni: (bi, 0)),
            scratch_shapes=[
                pltpu.VMEM((TB, D_pad), feats.dtype),   # pre-scaled anchor
                pltpu.VMEM((TB, 1), jnp.float32),       # running max m
                pltpu.VMEM((TB, 1), jnp.float32),       # running exp-sum l
                pltpu.VMEM((TB, 1), jnp.float32),       # running pos-logit sum s
            ]),
        compiler_params=pltpu.CompilerParams(
            dimension_semantics=("parallel", "arbitrary"),
            vmem_limit_bytes=int(budget)),
    )(lc, lr, pc, anchor_p, ct_p)

    # loss.view(anchor_count, batch_size).mean() * 0.1  (padded rows are exactly 0)
    return 0.1 * jnp.sum(loss_rows) / float(B)


def _reference_supcon(features, labels, *, temperature=0.1,
                      base_temperature=0.07, ignore_index=-1):
    """Pure-JAX transcription of the PyTorch forward (contrast_mode='one', V=1)."""
    B, V = features.shape[0], features.shape[1]
    feats = features.reshape(B, V, -1).astype(jnp.float32)
    labels = labels.reshape(-1).astype(jnp.int32)
    mask = (labels[:, None] == labels[None, :]).astype(jnp.float32)
    ignored = (labels == ignore_index)
    mask = jnp.where(ignored[None, :], 0.0, mask)
    contrast = jnp.swapaxes(feats, 0, 1).reshape(V * B, -1)
    anchor = feats[:, 0]
    adc = (anchor @ contrast.T) / temperature
    logits = adc - jnp.max(adc, axis=1, keepdims=True)
    mask = jnp.tile(mask, (1, V))
    logits_mask = 1.0 - jnp.eye(B, V * B, dtype=jnp.float32)
    logits_mask = jnp.where(jnp.tile(ignored, V)[None, :], 0.0, logits_mask)
    mask = mask * logits_mask
    exp_logits = jnp.exp(logits) * logits_mask
    log_prob = logits - jnp.log(exp_logits.sum(1, keepdims=True))
    mean_log_prob_pos = (mask * log_prob).sum(1) / (mask.sum(1) + 1e-12)
    loss = -(temperature / base_temperature) * mean_log_prob_pos
    return 0.1 * loss.mean()


if __name__ == "__main__":
    key = jax.random.PRNGKey(0)
    B, V, C, S = 8, 1, 4, 8        # features: [bsz, n_views, C, S] -> D = 32
    raw = jax.random.normal(key, (B, V, C, S), dtype=jnp.float32)
    # SupCon operates on L2-normalized projections; normalizing also keeps the
    # softmax denominator away from f32 exp-underflow.
    flat = raw.reshape(B, V, -1)
    flat = flat / jnp.linalg.norm(flat, axis=-1, keepdims=True)
    features = flat.reshape(B, V, C, S)
    labels = jnp.array([0, 1, 0, 2, -1, 1, 2, 0], dtype=jnp.int32)  # incl. ignore_index

    loss = jax.block_until_ready(supcon_loss(features, labels))
    ref = jax.block_until_ready(_reference_supcon(features, labels))

    assert bool(jnp.isfinite(loss)), float(loss)
    assert abs(float(loss) - float(ref)) < 1e-4, (float(loss), float(ref))
    print("KERNEL_OK")
</pallas_src>

<mosaic_0001>
module attributes {stable_mosaic.version = 11 : i64} {
  func.func @_supcon_kernel(%arg0: i32, %arg1: i32, %arg2: memref<8x1xi32, #tpu.memory_space<vmem>>, %arg3: memref<1x128xi32, #tpu.memory_space<vmem>>, %arg4: memref<8x1xf32, #tpu.memory_space<vmem>>, %arg5: memref<8x32xf32, #tpu.memory_space<vmem>>, %arg6: memref<32x128xf32, #tpu.memory_space<vmem>>, %arg7: memref<8x1xf32, #tpu.memory_space<vmem>>, %arg8: memref<8x32xf32, #tpu.memory_space<vmem>>, %arg9: memref<8x1xf32, #tpu.memory_space<vmem>>, %arg10: memref<8x1xf32, #tpu.memory_space<vmem>>, %arg11: memref<8x1xf32, #tpu.memory_space<vmem>>) attributes {dimension_semantics = [#tpu.dimension_semantics<parallel>, #tpu.dimension_semantics<arbitrary>], iteration_bounds = array<i64: 1, 1>, scalar_prefetch = 0 : i64, scratch_operands = 4 : i64, tpu.core_type = #tpu.core_type<tc>, window_params = [{transform_indices = @transform_0, window_bounds = array<i64: 8, 1>}, {transform_indices = @transform_1, window_bounds = array<i64: 1, 128>}, {transform_indices = @transform_2, window_bounds = array<i64: 8, 1>}, {transform_indices = @transform_3, window_bounds = array<i64: 8, 32>}, {transform_indices = @transform_4, window_bounds = array<i64: 32, 128>}, {transform_indices = @transform_5, window_bounds = array<i64: 8, 1>}]} {
    %c0_i32 = arith.constant 0 : i32
    %0 = arith.cmpi eq, %arg1, %c0_i32 : i32
    %1 = arith.extui %0 : i1 to i32
    %c0_i32_0 = arith.constant 0 : i32
    %2 = arith.cmpi ne, %1, %c0_i32_0 : i32
    scf.if %2 {
      %c0_27 = arith.constant 0 : index
      %c0_28 = arith.constant 0 : index
      %55 = vector.load %arg5[%c0_27, %c0_28] : memref<8x32xf32, #tpu.memory_space<vmem>>, vector<8x32xf32>
      %cst_29 = arith.constant 1.000000e+01 : f32
      %56 = vector.broadcast %cst_29 : f32 to vector<8x32xf32>
      %57 = arith.mulf %55, %56 : vector<8x32xf32>
      %c0_30 = arith.constant 0 : index
      %c0_31 = arith.constant 0 : index
      %58 = vector.load %arg8[%c0_30, %c0_31] : memref<8x32xf32, #tpu.memory_space<vmem>>, vector<8x32xf32>
      tpu.vector_store %arg8[%c0_30, %c0_31], %57 {strides = array<i32>} : memref<8x32xf32, #tpu.memory_space<vmem>>, vector<8x32xf32>,
      %cst_32 = arith.constant 0xFF800000 : f32
      %59 = vector.broadcast %cst_32 : f32 to vector<8x1xf32>
      %c0_33 = arith.constant 0 : index
      %c0_34 = arith.constant 0 : index
      %60 = vector.load %arg9[%c0_33, %c0_34] : memref<8x1xf32, #tpu.memory_space<vmem>>, vector<8x1xf32>
      tpu.vector_store %arg9[%c0_33, %c0_34], %59 {strides = array<i32>} : memref<8x1xf32, #tpu.memory_space<vmem>>, vector<8x1xf32>,
      %cst_35 = arith.constant 0.000000e+00 : f32
      %61 = vector.broadcast %cst_35 : f32 to vector<8x1xf32>
      %c0_36 = arith.constant 0 : index
      %c0_37 = arith.constant 0 : index
      %62 = vector.load %arg10[%c0_36, %c0_37] : memref<8x1xf32, #tpu.memory_space<vmem>>, vector<8x1xf32>
      tpu.vector_store %arg10[%c0_36, %c0_37], %61 {strides = array<i32>} : memref<8x1xf32, #tpu.memory_space<vmem>>, vector<8x1xf32>,
      %cst_38 = arith.constant 0.000000e+00 : f32
      %63 = vector.broadcast %cst_38 : f32 to vector<8x1xf32>
      %c0_39 = arith.constant 0 : index
      %c0_40 = arith.constant 0 : index
      %64 = vector.load %arg11[%c0_39, %c0_40] : memref<8x1xf32, #tpu.memory_space<vmem>>, vector<8x1xf32>
      tpu.vector_store %arg11[%c0_39, %c0_40], %63 {strides = array<i32>} : memref<8x1xf32, #tpu.memory_space<vmem>>, vector<8x1xf32>,
    } else {
    }
    %c0 = arith.constant 0 : index
    %c0_1 = arith.constant 0 : index
    %3 = vector.load %arg8[%c0, %c0_1] : memref<8x32xf32, #tpu.memory_space<vmem>>, vector<8x32xf32>
    %c0_2 = arith.constant 0 : index
    %c0_3 = arith.constant 0 : index
    %4 = vector.load %arg6[%c0_2, %c0_3] : memref<32x128xf32, #tpu.memory_space<vmem>>, vector<32x128xf32>
    %cst = arith.constant dense<0.000000e+00> : vector<8x128xf32>
    %5 = tpu.matmul %3, %4, %cst {dimension_numbers = #tpu.dot_dimension_numbers<[1], [0], [0], [1], [0, 0, 1, 1], [], []>} : vector<8x32xf32>, vector<32x128xf32>, vector<8x128xf32> -> vector<8x128xf32>
    %c8_i32 = arith.constant 8 : i32
    %6 = arith.muli %arg0, %c8_i32 : i32
    %7 = tpu.iota {dimensions = array<i32: 0>} : vector<8x1xi32>
    %8 = vector.broadcast %6 : i32 to vector<8x1xi32>
    %9 = arith.addi %8, %7 : vector<8x1xi32>
    %c128_i32 = arith.constant 128 : i32
    %10 = arith.muli %arg1, %c128_i32 : i32
    %11 = tpu.iota {dimensions = array<i32: 1>} : vector<1x128xi32>
    %12 = vector.broadcast %10 : i32 to vector<1x128xi32>
    %13 = arith.addi %12, %11 : vector<1x128xi32>
    %c0_4 = arith.constant 0 : index
    %c0_5 = arith.constant 0 : index
    %14 = vector.load %arg3[%c0_4, %c0_5] : memref<1x128xi32, #tpu.memory_space<vmem>>, vector<1x128xi32>
    %c-1_i32 = arith.constant -1 : i32
    %15 = vector.broadcast %c-1_i32 : i32 to vector<1x128xi32>
    %16 = arith.cmpi ne, %14, %15 : vector<1x128xi32>
    %17 = vector.broadcast %9 : vector<8x1xi32> to vector<8x128xi32>
    %18 = vector.broadcast %13 : vector<1x128xi32> to vector<8x128xi32>
    %19 = arith.cmpi ne, %17, %18 : vector<8x128xi32>
    %20 = vector.broadcast %16 : vector<1x128xi1> to vector<8x128xi1>
    %21 = arith.andi %19, %20 : vector<8x128xi1>
    %c0_6 = arith.constant 0 : index
    %c0_7 = arith.constant 0 : index
    %22 = vector.load %arg2[%c0_6, %c0_7] : memref<8x1xi32, #tpu.memory_space<vmem>>, vector<8x1xi32>
    %23 = vector.broadcast %22 : vector<8x1xi32> to vector<8x128xi32>
    %24 = vector.broadcast %14 : vector<1x128xi32> to vector<8x128xi32>
    %25 = arith.cmpi eq, %23, %24 : vector<8x128xi32>
    %26 = arith.andi %25, %21 : vector<8x128xi1>
    %c0_8 = arith.constant 0 : index
    %c0_9 = arith.constant 0 : index
    %27 = vector.load %arg9[%c0_8, %c0_9] : memref<8x1xf32, #tpu.memory_space<vmem>>, vector<8x1xf32>
    %cst_10 = arith.constant dense<0xFF800000> : vector<8xf32>
    %28 = vector.multi_reduction <maximumf>, %5, %cst_10 [1] : vector<8x128xf32> to vector<8xf32>
    %29 = vector.shape_cast %28 : vector<8xf32> to vector<8x1xf32>
    %30 = arith.maximumf %27, %29 : vector<8x1xf32>
    %31 = arith.subf %27, %30 : vector<8x1xf32>
    %32 = math.exp %31 : vector<8x1xf32>
    %33 = vector.broadcast %30 : vector<8x1xf32> to vector<8x128xf32>
    %34 = arith.subf %5, %33 : vector<8x128xf32>
    %35 = math.exp %34 : vector<8x128xf32>
    %cst_11 = arith.constant 0.000000e+00 : f32
    %36 = vector.broadcast %cst_11 : f32 to vector<8x128xf32>
    %37 = arith.select %21, %35, %36 : vector<8x128xi1>, vector<8x128xf32>
    %c0_12 = arith.constant 0 : index
    %c0_13 = arith.constant 0 : index
    %38 = vector.load %arg10[%c0_12, %c0_13] : memref<8x1xf32, #tpu.memory_space<vmem>>, vector<8x1xf32>
    %39 = arith.mulf %32, %38 : vector<8x1xf32>
    %cst_14 = arith.constant dense<0.000000e+00> : vector<8xf32>
    %40 = vector.multi_reduction <add>, %37, %cst_14 [1] : vector<8x128xf32> to vector<8xf32>
    %41 = vector.shape_cast %40 : vector<8xf32> to vector<8x1xf32>
    %42 = arith.addf %39, %41 : vector<8x1xf32>
    %c0_15 = arith.constant 0 : index
    %c0_16 = arith.constant 0 : index
    %43 = vector.load %arg10[%c0_15, %c0_16] : memref<8x1xf32, #tpu.memory_space<vmem>>, vector<8x1xf32>
    tpu.vector_store %arg10[%c0_15, %c0_16], %42 {strides = array<i32>} : memref<8x1xf32, #tpu.memory_space<vmem>>, vector<8x1xf32>,
    %c0_17 = arith.constant 0 : index
    %c0_18 = arith.constant 0 : index
    %44 = vector.load %arg9[%c0_17, %c0_18] : memref<8x1xf32, #tpu.memory_space<vmem>>, vector<8x1xf32>
    tpu.vector_store %arg9[%c0_17, %c0_18], %30 {strides = array<i32>} : memref<8x1xf32, #tpu.memory_space<vmem>>, vector<8x1xf32>,
    %c0_19 = arith.constant 0 : index
    %c0_20 = arith.constant 0 : index
    %45 = vector.load %arg11[%c0_19, %c0_20] : memref<8x1xf32, #tpu.memory_space<vmem>>, vector<8x1xf32>
    %cst_21 = arith.constant 0.000000e+00 : f32
    %46 = vector.broadcast %cst_21 : f32 to vector<8x128xf32>
    %47 = arith.select %26, %5, %46 : vector<8x128xi1>, vector<8x128xf32>
    %cst_22 = arith.constant dense<0.000000e+00> : vector<8xf32>
    %48 = vector.multi_reduction <add>, %47, %cst_22 [1] : vector<8x128xf32> to vector<8xf32>
    %49 = vector.shape_cast %48 : vector<8xf32> to vector<8x1xf32>
    %50 = arith.addf %45, %49 : vector<8x1xf32>
    %c0_23 = arith.constant 0 : index
    %c0_24 = arith.constant 0 : index
    %51 = vector.load %arg11[%c0_23, %c0_24] : memref<8x1xf32, #tpu.memory_space<vmem>>, vector<8x1xf32>
    tpu.vector_store %arg11[%c0_23, %c0_24], %50 {strides = array<i32>} : memref<8x1xf32, #tpu.memory_space<vmem>>, vector<8x1xf32>,
    %c0_i32_25 = arith.constant 0 : i32
    %52 = arith.cmpi eq, %arg1, %c0_i32_25 : i32
    %53 = arith.extui %52 : i1 to i32
    %c0_i32_26 = arith.constant 0 : i32
    %54 = arith.cmpi ne, %53, %c0_i32_26 : i32
    scf.if %54 {
      %c0_27 = arith.constant 0 : index
      %c0_28 = arith.constant 0 : index
      %55 = vector.load %arg4[%c0_27, %c0_28] : memref<8x1xf32, #tpu.memory_space<vmem>>, vector<8x1xf32>
      %c0_29 = arith.constant 0 : index
      %c0_30 = arith.constant 0 : index
      %56 = vector.load %arg9[%c0_29, %c0_30] : memref<8x1xf32, #tpu.memory_space<vmem>>, vector<8x1xf32>
      %c0_31 = arith.constant 0 : index
      %c0_32 = arith.constant 0 : index
      %57 = vector.load %arg10[%c0_31, %c0_32] : memref<8x1xf32, #tpu.memory_space<vmem>>, vector<8x1xf32>
      %cst_33 = arith.constant 1.000000e-30 : f32
      %58 = vector.broadcast %cst_33 : f32 to vector<8x1xf32>
      %59 = arith.addf %57, %58 : vector<8x1xf32>
      %60 = math.log %59 : vector<8x1xf32>
      %61 = arith.addf %56, %60 : vector<8x1xf32>
      %c0_34 = arith.constant 0 : index
      %c0_35 = arith.constant 0 : index
      %62 = vector.load %arg11[%c0_34, %c0_35] : memref<8x1xf32, #tpu.memory_space<vmem>>, vector<8x1xf32>
      %63 = arith.mulf %55, %61 : vector<8x1xf32>
      %64 = arith.subf %62, %63 : vector<8x1xf32>
      %cst_36 = arith.constant 9.99999996E-13 : f32
      %65 = vector.broadcast %cst_36 : f32 to vector<8x1xf32>
      %66 = arith.addf %55, %65 : vector<8x1xf32>
      %67 = arith.divf %64, %66 : vector<8x1xf32>
      %cst_37 = arith.constant -1.42857146 : f32
      %68 = vector.broadcast %cst_37 : f32 to vector<8x1xf32>
      %69 = arith.mulf %68, %67 : vector<8x1xf32>
      %c0_38 = arith.constant 0 : index
      %c0_39 = arith.constant 0 : index
      %70 = vector.load %arg7[%c0_38, %c0_39] : memref<8x1xf32, #tpu.memory_space<vmem>>, vector<8x1xf32>
      tpu.vector_store %arg7[%c0_38, %c0_39], %69 {strides = array<i32>} : memref<8x1xf32, #tpu.memory_space<vmem>>, vector<8x1xf32>,
    } else {
    }
    return
  }
  func.func @transform_0(%arg0: i32, %arg1: i32) -> (i32, i32) {
    %c0_i32 = arith.constant 0 : i32
    %c0_i32_0 = arith.constant 0 : i32
    return %arg0, %c0_i32 : i32, i32
  }
  func.func @transform_1(%arg0: i32, %arg1: i32) -> (i32, i32) {
    %c0_i32 = arith.constant 0 : i32
    %c0_i32_0 = arith.constant 0 : i32
    return %c0_i32, %arg1 : i32, i32
  }
  func.func @transform_2(%arg0: i32, %arg1: i32) -> (i32, i32) {
    %c0_i32 = arith.constant 0 : i32
    %c0_i32_0 = arith.constant 0 : i32
    return %arg0, %c0_i32 : i32, i32
  }
  func.func @transform_3(%arg0: i32, %arg1: i32) -> (i32, i32) {
    %c0_i32 = arith.constant 0 : i32
    %c0_i32_0 = arith.constant 0 : i32
    return %arg0, %c0_i32 : i32, i32
  }
  func.func @transform_4(%arg0: i32, %arg1: i32) -> (i32, i32) {
    %c0_i32 = arith.constant 0 : i32
    %c0_i32_0 = arith.constant 0 : i32
    return %c0_i32, %arg1 : i32, i32
  }
  func.func @transform_5(%arg0: i32, %arg1: i32) -> (i32, i32) {
    %c0_i32 = arith.constant 0 : i32
    %c0_i32_0 = arith.constant 0 : i32
    return %arg0, %c0_i32 : i32, i32
  }
}

</mosaic_0001>

<llo_original>
// kernel: tpu_custom_call.1
$region0: #{tpu_custom_call.1}
  #allocation0 [shape = 'u32[]', space=smem, size = 0x4, offset = 0x4, fixed_abs, tag = 'smem constant byte address 0x4 - core index']
  #allocation1 [shape = 'u32[72,128]{1,0:T(1,128)}', space=vmem, size = 0x9000, scoped, tag = 'internal scratch']
  #allocation2 [shape = 'f32[8,32]{1,0:T(8,128)}', space=vmem, size = 0x1000, scoped, tag = 'scratch operand']
  #allocation3 [shape = 'f32[8,1]{1,0:T(8,128)}', space=vmem, size = 0x1000, scoped, tag = 'scratch operand']
  #allocation4 [shape = 'f32[8,1]{1,0:T(8,128)}', space=vmem, size = 0x1000, scoped, tag = 'scratch operand']
  #allocation5 [shape = 'f32[8,1]{1,0:T(8,128)}', space=vmem, size = 0x1000, scoped, tag = 'scratch operand']
  %s0 = inlined_call_operand.vmem [shape: s32[8,1], index: 0, kind: input, shape index: {}]
  %s1 = inlined_call_operand.vmem [shape: s32[1,128], index: 1, kind: input, shape index: {}]
  %s2 = inlined_call_operand.vmem [shape: f32[8,1], index: 2, kind: input, shape index: {}]
  %s3 = inlined_call_operand.vmem [shape: f32[8,32], index: 3, kind: input, shape index: {}]
  %s4 = inlined_call_operand.hbm [shape: f32[32,128], index: 4, kind: input, shape index: {}]
  %s5 = inlined_call_operand.vmem [shape: f32[8,1], index: 5, kind: output, shape index: {}]
  %s6 = sld [smem:[#allocation0]]
  $region42: #{tpu_custom_call.1} parent=0
    _
  %s8 = ssub.s32 1, %s6
  %s9 = scalar_select 0, %s8, %s6
  $region1: #{tpu_custom_call.1} parent=0
    #allocation6 [shape = 'u8[16384]{0}', space=vmem, size = 0x4000, scoped, tag = 'input window, operand 4, single buffered']
    #allocation7 [shape = 's32[1]{0}', space=sflag, size = 0x4, scoped, tag = 'scoped memory for tpu_custom_call.1']
    %10 = vsyncpa [#allocation7], 0
    // Predicated region
    $region2: #{tpu_custom_call.1} parent=1 // pred_check
      _
    $region3: #{tpu_custom_call.1} parent=1 // pred_check_branch
      %12 = sbr.rel (0) target = $region5
    $region4: #{tpu_custom_call.1} parent=1 // pred_region
      _
    $region5: #{tpu_custom_call.1} parent=1 // pred_fallthru
      _
    // Predicated region
    $region6: #{tpu_custom_call.1} parent=1 // pred_check
      _
    $region7: #{tpu_custom_call.1} parent=1 // pred_check_branch
      %14 = sbr.rel (0) target = $region9
    $region8: #{tpu_custom_call.1} parent=1 // pred_region
      _
    $region9: #{tpu_custom_call.1} parent=1 // pred_fallthru
      _
    // Predicated region
    $region10: #{tpu_custom_call.1} parent=1 // pred_check
      _
    $region11: #{tpu_custom_call.1} parent=1 // pred_check_branch
      %16 = sbr.rel (0) target = $region13
    $region12: #{tpu_custom_call.1} parent=1 // pred_region
      _
    $region13: #{tpu_custom_call.1} parent=1 // pred_fallthru
      _
    // Predicated region
    $region14: #{tpu_custom_call.1} parent=1 // pred_check
      _
    $region15: #{tpu_custom_call.1} parent=1 // pred_check_branch
      %18 = sbr.rel (0) target = $region17
    $region16: #{tpu_custom_call.1} parent=1 // pred_region
      _
    $region17: #{tpu_custom_call.1} parent=1 // pred_fallthru
      _
    // Predicated region
    $region18: #{tpu_custom_call.1} parent=1 // pred_check
      _
    $region19: #{tpu_custom_call.1} parent=1 // pred_check_branch
      %20 = sbr.rel (0) target = $region21
    $region20: #{tpu_custom_call.1} parent=1 // pred_region
      %22 = vsyncadd [#allocation7], 0
      %s23 = sshll.u32 %s4, 4
      %s24 = int_to_ptr.hbm [resolvable:$true] %s23
      %s25 = sshll.u32 [#allocation6], 4
      %s26 = int_to_ptr.vmem [resolvable:$true] %s25
      %31 = dma.hbm_to_vmem [thread:$0]  %s24, 512, %s26, [#allocation7], 128, 128, 8
    $region21: #{tpu_custom_call.1} parent=1 // pred_fallthru
      _
    // Predicated region
    $region22: #{tpu_custom_call.1} parent=1 // pred_check
      _
    $region23: #{tpu_custom_call.1} parent=1 // pred_check_branch
      %33 = sbr.rel (0) target = $region25
    $region24: #{tpu_custom_call.1} parent=1 // pred_region
      %35 = dma.done [#allocation7], 512
    $region25: #{tpu_custom_call.1} parent=1 // pred_fallthru
      _
    %p36 = scmp.eq.s32.totalorder 0, 0
    // Predicated region
    $region26: #{tpu_custom_call.1} parent=1 // pred_check
      %p37 = pneg %p36
    $region27: #{tpu_custom_call.1} parent=1 // pred_check_branch
      %39 = sbr.rel (%p37) target = $region29
    $region28: #{tpu_custom_call.1} parent=1 // pred_region
      %v40 = vld [vmem:[%s3] sm:$0xff]
      %v41 = vmul.f32 %v40, 10.0
      %vm42 = vcmask 261120
      %43 = vst.msk [vmem:[#allocation2] sm:$0xff] %vm42, %v41
      %vm44 = vcmask 7168
      %45 = vst.msk [vmem:[#allocation3] sm:$0xff] %vm44, -inf
      %46 = vst.msk [vmem:[#allocation4] sm:$0xff] %vm44, 0.0
      %47 = vst.msk [vmem:[#allocation5] sm:$0xff] %vm44, 0.0
    $region29: #{tpu_custom_call.1} parent=1 // pred_fallthru
      _
    %v48 = vld [vmem:[#allocation2] sm:$0xff]
    %v49 = vld [vmem:[#allocation6] sm:$0xff]
    %v50 = vld [vmem:[#allocation6 + $0x8] sm:$0xff]
    %v51 = vld [vmem:[#allocation6 + $0x10] sm:$0xff]
    %v52 = vld [vmem:[#allocation6 + $0x18] sm:$0xff]
    %vm53 = vcmask 261120
    %v55 = vsel %vm53, %v48, 0
    %57 = vmatpush.msra.mxu0 0.0
    %58 = vmatpush.msra.mxu0 0.0
    %59 = vmatpush.msra.mxu0 0.0
    %60 = vmatpush.msra.mxu0 0.0
    %61 = vmatpush.msra.mxu0 0.0
    %62 = vmatpush.msra.mxu0 0.0
    %63 = vmatpush.msra.mxu0 0.0
    %64 = vmatpush.msra.mxu0 0.0
    %65 = vmatpush.msra.mxu0 0.0
    %66 = vmatpush.msra.mxu0 0.0
    %67 = vmatpush.msra.mxu0 0.0
    %68 = vmatpush.msra.mxu0 0.0
    %69 = vmatpush.msra.mxu0 %v52
    %70 = vmatpush.msra.mxu0 %v51
    %71 = vmatpush.msra.mxu0 %v50
    %72 = vmatpush.msra.mxu0 %v49
    %73 = vmatmul.f32.gmra.mxu0 %v55
    %v74 = vpop.f32.mrf.mxu0
    %v75 = vadd.f32 0.0, %v74
    %76 = vdwg.mxu0
    %s77 = smul.u32 0, 8
    %v78 = vlaneseq
    %v79 = vshrl.u32 %v78, 7
    %v80 = vstv %s77
    %v81 = vadd.s32 %v80, %v79
    %s82 = smul.u32 0, 128
    %v83 = vlaneseq
    %v84 = vand.u32 %v83, 127
    %v85 = vstv %s82
    %v86 = vadd.s32 %v85, %v84
    %v87 = vld [vmem:[%s1] sm:$0x1]
    %vm88 = vcmp.ne.s32.totalorder %v87, 4294967295
    %vm89 = vcmp.ne.s32.totalorder %v81, %v86
    %v90 = vsel %vm88, 1, 0
    %v91 = vperm.slane %v90, 0
    %vm92 = vcmp.eq.s32.totalorder %v91, 1
    %vm93 = vmand %vm89, %vm92
    %v94 = vld [vmem:[%s0] sm:$0xff]
    %95 = vset.pattern.permute.xlu0 0
    %96 = vperm.xlu0 %95, %v94
    %v97 = vpop.permute.xlu0 %96
    %v98 = vperm.slane %v87, 0
    %vm99 = vcmp.eq.s32.totalorder %v97, %v98
    %vm100 = vmand %vm99, %vm93
    %v101 = vld [vmem:[#allocation3] sm:$0xff]
    %102 = vmax.xlane.f32.xlu0 %v75
    %v103 = vpop.xlane.xlu0 %102
    %v104 = vmax.f32 %v101, %v103
    %v105 = vsub.f32 %v101, %v104
    %v106 = vmul.f32 %v105, 1.442695
    %v107 = vpow.pop %v106
    %109 = vset.pattern.permute.xlu0 0
    %110 = vperm.xlu0 %109, %v104
    %v111 = vpop.permute.xlu0 %110
    %v113 = vsub.f32 %v75, %v111
    %v114 = vmul.f32 %v113, 1.442695
    %v115 = vpow.pop %v114
    %v116 = vsel %vm93, %v115, 0.0
    %v117 = vld [vmem:[#allocation4] sm:$0xff]
    %v118 = vmul.f32 %v107, %v117
    %119 = vadd.xlane.f32.xlu0 %v116
    %v120 = vpop.xlane.xlu0 %119
    %v121 = vadd.f32 %v118, %v120
    %vm122 = vcmask 7168
    %123 = vst.msk [vmem:[#allocation4] sm:$0xff] %vm122, %v121
    %124 = vst.msk [vmem:[#allocation3] sm:$0xff] %vm122, %v104
    %v125 = vld [vmem:[#allocation5] sm:$0xff]
    %v126 = vsel %vm100, %v75, 0.0
    %127 = vadd.xlane.f32.xlu0 %v126
    %v128 = vpop.xlane.xlu0 %127
    %v129 = vadd.f32 %v125, %v128
    %130 = vst.msk [vmem:[#allocation5] sm:$0xff] %vm122, %v129
    // Predicated region
    $region30: #{tpu_custom_call.1} parent=1 // pred_check
      %p131 = pneg %p36
    $region31: #{tpu_custom_call.1} parent=1 // pred_check_branch
      %133 = sbr.rel (%p131) target = $region33
    $region32: #{tpu_custom_call.1} parent=1 // pred_region
      %v134 = vld [vmem:[%s2] sm:$0xff]
      %v135 = vld [vmem:[#allocation3] sm:$0xff]
      %v136 = vld [vmem:[#allocation4] sm:$0xff]
      %v137 = vadd.f32 %v136, 1e-30
      %v138 = vlog2.pop %v137
      %v139 = vmul.f32 %v138, 0.6931472
      %v140 = vadd.f32 %v135, %v139
      %v141 = vld [vmem:[#allocation5] sm:$0xff]
      %v142 = vmul.f32 %v134, %v140
      %v143 = vsub.f32 %v141, %v142
      %v144 = vadd.f32 %v134, 1e-12
      %v145 = vrcp.pop %v144
      %v146 = vmul.f32 %v144, %v145
      %v147 = vsub.f32 1.0, %v146
      %v148 = vmul.f32 %v145, %v147
      %v149 = vadd.f32 %v145, %v148
      %vm150 = vweird.f32 %v144
      %vm151 = vweird.f32 %v145
      %vm152 = vmor %vm150, %vm151
      %v153 = vsel %vm152, %v145, %v149
      %v154 = vand.u32 2147483647, %v144
      %vm155 = vcmp.eq.f32.partialorder %v154, 8.507059e+37
      %v156 = vand.u32 %v144, 2147483648
      %v157 = vor.u32 1.1754944e-38, %v156
      %v158 = vsel %vm155, %v157, %v153
      %v159 = vmul.f32 %v143, %v158
      %v160 = vmul.f32 %v159, -1.4285715
      %161 = vst.msk [vmem:[%s5] sm:$0xff] %vm122, %v160
    $region33: #{tpu_custom_call.1} parent=1 // pred_fallthru
      _
    // Predicated region
    $region34: #{tpu_custom_call.1} parent=1 // pred_check
      _
    $region35: #{tpu_custom_call.1} parent=1 // pred_check_branch
      %163 = sbr.rel (0) target = $region37
    $region36: #{tpu_custom_call.1} parent=1 // pred_region
      _
    $region37: #{tpu_custom_call.1} parent=1 // pred_fallthru
      _
    // Predicated region
    $region38: #{tpu_custom_call.1} parent=1 // pred_check
      _
    $region39: #{tpu_custom_call.1} parent=1 // pred_check_branch
      %165 = sbr.rel (0) target = $region41
    $region40: #{tpu_custom_call.1} parent=1 // pred_region
      _
    $region41: #{tpu_custom_call.1} parent=1 // pred_fallthru
      _
    %166 = vsyncpa [#allocation7], 1

</llo_original>
